<compile_context>
chip_gen: v7x
topology: tpu7x:2x2x1
jax: 0.10.0
libtpu: 0.0.40
codegen_flags: <defaults>
</compile_context>

<pallas_src>
import math

import numpy as np

import jax
import jax.numpy as jnp
from jax.experimental import pallas as pl
from jax.experimental.pallas import tpu as pltpu


def _t5_cond_kernel(x_ref, w_ref, b_ref, m_ref, out_ref):
    """out = (x @ w + b) * mask for one row tile.

    x_ref:   [TM, D]  bf16/f32  activation tile (T5 last_hidden_state rows)
    w_ref:   [D, O]   bf16      resident projection weight (pre-transposed)
    b_ref:   [1, O]   f32       bias
    m_ref:   [TM, 1]  bf16      per-row mask (1 = real token, 0 = pad)
    out_ref: [TM, O]  bf16/f32  output tile
    """
    x = x_ref[...].astype(jnp.bfloat16)                       # full-rate bf16 MXU path
    y = jnp.dot(x, w_ref[...], preferred_element_type=jnp.float32)
    # Bias-add and masking in f32 on the VPU (safe on v5e, which lacks bf16 VALU).
    y = (y + b_ref[...]) * m_ref[...].astype(jnp.float32)
    out_ref[...] = y.astype(out_ref.dtype)


def prepare_output_proj_params(weight, bias):
    """One-time prep at parameter-load time (NOT per forward call):
    transpose nn.Linear weight [O, D] -> [D, O] and cast to bf16; bias -> [1, O] f32."""
    return weight.T.astype(jnp.bfloat16), bias.reshape(1, -1).astype(jnp.float32)


def _round_up(x, m):
    return ((x + m - 1) // m) * m


def _vmem_budget_bytes():
    """Per-kernel VMEM budget derived from the actual chip (64 MiB physical on
    v7x, 128 MiB on v5e/v6e), with headroom for compiler-internal scratch.
    Falls back to the smallest generation (v7x) if the query is unavailable."""
    cap = None
    try:
        cap = getattr(pltpu.get_tpu_info(), "vmem_capacity_bytes", None)
    except Exception:
        cap = None
    if not cap:
        cap = 64 * 1024 * 1024
    return int(cap * 0.65)


def _select_tile_rows(bt, d, o, x_item, mask_item, out_item, budget_bytes):
    """Largest power-of-two row tile whose pipelined working set fits the budget.

    Accounting (per perf review):
      * activation / mask / output tiles are double-buffered by the pipeline,
      * the (TM, 1) mask block lane-pads to (TM, 128) in VMEM,
      * resident weight/bias are counted with 2 buffers even though we request
        pl.Buffered(1), so the estimate stays safe if Mosaic keeps two copies.
    """
    resident = 2 * (d * o * 2 + 8 * o * 4)      # bf16 weight + sublane-padded f32 bias
    tm = 4096                                    # start big: the kernel is HBM-bound
    while tm > 8:
        per_tile = 2 * tm * (d * x_item + 128 * mask_item + o * out_item)
        if resident + per_tile <= budget_bytes:
            break
        tm //= 2
    tm = max(tm, 8)
    if bt <= 8:
        return bt                                # one tiny tile covering everything
    # Guarantee >= 2 roughly balanced row tiles so the "parallel" grid axis can
    # actually shard across both TensorCores on v7x (no-op on v5e/v6e).
    tm = min(tm, _round_up(-(-bt // 2), 8))
    return tm


def _projection_call(x2, m2, weight_t, bias_row, tm, out_dtype,
                     vmem_limit_bytes, resident_mode):
    bt, d = x2.shape
    o = weight_t.shape[1]
    grid = (pl.cdiv(bt, tm),)
    res_kwargs = {} if resident_mode is None else {"pipeline_mode": resident_mode}

    cost = pl.CostEstimate(
        flops=2 * bt * d * o,
        transcendentals=0,
        bytes_accessed=(bt * d * x2.dtype.itemsize          # activations in
                        + d * o * weight_t.dtype.itemsize   # weight (fetched once)
                        + o * bias_row.dtype.itemsize       # bias   (fetched once)
                        + bt * m2.dtype.itemsize            # mask
                        + bt * o * np.dtype(out_dtype).itemsize),  # output
    )

    return pl.pallas_call(
        _t5_cond_kernel,
        out_shape=jax.ShapeDtypeStruct((bt, o), out_dtype),
        grid=grid,
        in_specs=[
            pl.BlockSpec((tm, d), lambda i: (i, 0)),               # row tile (pipelined)
            pl.BlockSpec((d, o), lambda i: (0, 0), **res_kwargs),  # weight: resident
            pl.BlockSpec((1, o), lambda i: (0, 0), **res_kwargs),  # bias:   resident
            pl.BlockSpec((tm, 1), lambda i: (i, 0)),               # mask row tile
        ],
        out_specs=pl.BlockSpec((tm, o), lambda i: (i, 0)),
        compiler_params=pltpu.CompilerParams(
            # Row tiles are fully independent -> shard across both TCs on v7x.
            dimension_semantics=("parallel",),
            # Explicit limit: the tile selector's budget is trusted on every
            # generation (v5e's 16 MiB default scoped VMEM would otherwise bite).
            vmem_limit_bytes=int(vmem_limit_bytes),
        ),
        cost_estimate=cost,
    )(x2, weight_t, bias_row, m2)


def t5_conditioner_forward(embeds, mask, weight_t, bias_row, out_dtype=jnp.bfloat16):
    """Pallas implementation of T5Conditioner.forward's projection + masking.

    Args:
        embeds:   [B, T, dim] bf16/f32   -- T5 encoder last_hidden_state.
        mask:     [B, T]      int32      -- attention mask (1 = token, 0 = pad).
        weight_t: [dim, output_dim] bf16 -- pre-transposed output_proj weight
                                            (see prepare_output_proj_params).
        bias_row: [1, output_dim]  f32   -- output_proj bias.
        out_dtype: output dtype; bf16 halves the dominant writeback traffic.

    Returns:
        (embeds_out [B, T, output_dim] out_dtype, mask [B, T] int32)
    """
    B, T, D = embeds.shape
    O = weight_t.shape[1]
    BT = B * T

    x2 = embeds.reshape(BT, D)
    # 0/1 mask is exact in bf16; quarters the mask DMA + padded VMEM vs f32.
    m2 = mask.astype(jnp.bfloat16).reshape(BT, 1)

    vmem_budget = _vmem_budget_bytes()
    TM = _select_tile_rows(BT, D, O, x2.dtype.itemsize, m2.dtype.itemsize,
                           np.dtype(out_dtype).itemsize, vmem_budget)

    # Single VMEM copy of the constant-index weight/bias when supported; fall
    # back to default double buffering (already covered by the VMEM accounting).
    resident_mode = pl.Buffered(1) if hasattr(pl, "Buffered") else None
    try:
        out = _projection_call(x2, m2, weight_t, bias_row, TM, out_dtype,
                               vmem_budget, resident_mode)
    except Exception:
        if resident_mode is None:
            raise
        out = _projection_call(x2, m2, weight_t, bias_row, TM, out_dtype,
                               vmem_budget, None)

    # NOTE: when BT % TM != 0 the last grid step reads past the row extent;
    # Pallas clips the out-of-range output stores, so no explicit padding of
    # BT (and no extra HBM copy of the activations) is needed.
    return out.reshape(B, T, O), mask


def _init_linear_params(key, in_dim, out_dim):
    """Deterministic init matching nn.Linear defaults: U(-1/sqrt(in), 1/sqrt(in))."""
    kw, kb = jax.random.split(key)
    bound = 1.0 / math.sqrt(in_dim)
    weight = jax.random.uniform(kw, (out_dim, in_dim), jnp.float32, -bound, bound)
    bias = jax.random.uniform(kb, (out_dim,), jnp.float32, -bound, bound)
    return weight, bias


if __name__ == "__main__":
    # Config: name='t5-small' -> dim = 512, small output_dim for the demo.
    dim = 512          # MODELS_DIMS['t5-small']
    output_dim = 128
    B, T = 2, 8        # NOTE: demo-sized; tiling logic targets production B*T.

    key = jax.random.PRNGKey(0)
    k_emb, k_lin = jax.random.split(key)

    # Synthetic stand-in for the frozen T5 encoder's last_hidden_state in bf16
    # (halves the dominant activation HBM traffic).
    embeds = jax.random.normal(k_emb, (B, T, dim), dtype=jnp.float32).astype(jnp.bfloat16)
    # Attention mask: last 3 tokens of the second sequence are padding.
    mask = jnp.ones((B, T), dtype=jnp.int32)
    mask = mask.at[1, T - 3:].set(0)

    weight, bias = _init_linear_params(k_lin, dim, output_dim)
    # Done ONCE at parameter-load time, not per forward call.
    weight_t, bias_row = prepare_output_proj_params(weight, bias)

    out_embeds, out_mask = t5_conditioner_forward(embeds, mask, weight_t, bias_row)
    jax.block_until_ready(out_embeds)
    jax.block_until_ready(out_mask)

    # Reference in plain JAX at matching (bf16-input, f32-accumulate) precision.
    # The bf16 activation/output casts are an intentional precision trade-off
    # relative to a pure-f32 PyTorch reference.
    x_f32 = embeds.astype(jnp.float32).reshape(B * T, dim)
    w_f32 = weight_t.astype(jnp.float32)
    ref = jnp.dot(x_f32, w_f32, precision=jax.lax.Precision.HIGHEST) + bias_row
    ref = ref.reshape(B, T, output_dim) * mask.astype(jnp.float32)[..., None]

    assert out_embeds.shape == (B, T, output_dim)
    assert out_embeds.dtype == jnp.bfloat16
    assert out_mask.shape == (B, T)
    max_err = float(jnp.max(jnp.abs(out_embeds.astype(jnp.float32) - ref)))
    assert max_err < 2e-2, f"max abs err {max_err}"
    assert bool(jnp.all(out_embeds[1, T - 3:] == 0.0))

    print("KERNEL_OK")
</pallas_src>

<mosaic_0001>
module attributes {stable_mosaic.version = 11 : i64} {
  func.func @_t5_cond_kernel(%arg0: i32, %arg1: memref<8x512xbf16, #tpu.memory_space<vmem>>, %arg2: memref<512x128xbf16, #tpu.memory_space<vmem>>, %arg3: memref<1x128xf32, #tpu.memory_space<vmem>>, %arg4: memref<8x1xbf16, #tpu.memory_space<vmem>>, %arg5: memref<8x128xbf16, #tpu.memory_space<vmem>>) attributes {dimension_semantics = [#tpu.dimension_semantics<parallel>], iteration_bounds = array<i64: 2>, scalar_prefetch = 0 : i64, scratch_operands = 0 : i64, tpu.core_type = #tpu.core_type<tc>, window_params = [{transform_indices = @transform_0, window_bounds = array<i64: 8, 512>}, {pipeline_mode = #tpu.pipeline_mode<synchronous>, transform_indices = @transform_1, window_bounds = array<i64: 512, 128>}, {pipeline_mode = #tpu.pipeline_mode<synchronous>, transform_indices = @transform_2, window_bounds = array<i64: 1, 128>}, {transform_indices = @transform_3, window_bounds = array<i64: 8, 1>}, {transform_indices = @transform_4, window_bounds = array<i64: 8, 128>}]} {
    %c0 = arith.constant 0 : index
    %c0_0 = arith.constant 0 : index
    %0 = vector.load %arg1[%c0, %c0_0] : memref<8x512xbf16, #tpu.memory_space<vmem>>, vector<8x512xbf16>
    %c0_1 = arith.constant 0 : index
    %c0_2 = arith.constant 0 : index
    %1 = vector.load %arg2[%c0_1, %c0_2] : memref<512x128xbf16, #tpu.memory_space<vmem>>, vector<512x128xbf16>
    %cst = arith.constant dense<0.000000e+00> : vector<8x128xf32>
    %2 = tpu.matmul %0, %1, %cst {dimension_numbers = #tpu.dot_dimension_numbers<[1], [0], [0], [1], [0, 0, 1, 1], [], []>} : vector<8x512xbf16>, vector<512x128xbf16>, vector<8x128xf32> -> vector<8x128xf32>
    %c0_3 = arith.constant 0 : index
    %c0_4 = arith.constant 0 : index
    %3 = vector.load %arg3[%c0_3, %c0_4] : memref<1x128xf32, #tpu.memory_space<vmem>>, vector<1x128xf32>
    %4 = vector.broadcast %3 : vector<1x128xf32> to vector<8x128xf32>
    %5 = arith.addf %2, %4 : vector<8x128xf32>
    %c0_5 = arith.constant 0 : index
    %c0_6 = arith.constant 0 : index
    %6 = vector.load %arg4[%c0_5, %c0_6] : memref<8x1xbf16, #tpu.memory_space<vmem>>, vector<8x1xbf16>
    %7 = arith.extf %6 : vector<8x1xbf16> to vector<8x1xf32>
    %8 = vector.broadcast %7 : vector<8x1xf32> to vector<8x128xf32>
    %9 = arith.mulf %5, %8 : vector<8x128xf32>
    %10 = arith.truncf %9 : vector<8x128xf32> to vector<8x128xbf16>
    %c0_7 = arith.constant 0 : index
    %c0_8 = arith.constant 0 : index
    %11 = vector.load %arg5[%c0_7, %c0_8] : memref<8x128xbf16, #tpu.memory_space<vmem>>, vector<8x128xbf16>
    tpu.vector_store %arg5[%c0_7, %c0_8], %10 {strides = array<i32>} : memref<8x128xbf16, #tpu.memory_space<vmem>>, vector<8x128xbf16>,
    return
  }
  func.func @transform_0(%arg0: i32) -> (i32, i32) {
    %c0_i32 = arith.constant 0 : i32
    %c0_i32_0 = arith.constant 0 : i32
    return %arg0, %c0_i32 : i32, i32
  }
  func.func @transform_1(%arg0: i32) -> (i32, i32) {
    %c0_i32 = arith.constant 0 : i32
    %c0_i32_0 = arith.constant 0 : i32
    %c0_i32_1 = arith.constant 0 : i32
    return %c0_i32, %c0_i32_0 : i32, i32
  }
  func.func @transform_2(%arg0: i32) -> (i32, i32) {
    %c0_i32 = arith.constant 0 : i32
    %c0_i32_0 = arith.constant 0 : i32
    %c0_i32_1 = arith.constant 0 : i32
    return %c0_i32, %c0_i32_0 : i32, i32
  }
  func.func @transform_3(%arg0: i32) -> (i32, i32) {
    %c0_i32 = arith.constant 0 : i32
    %c0_i32_0 = arith.constant 0 : i32
    return %arg0, %c0_i32 : i32, i32
  }
  func.func @transform_4(%arg0: i32) -> (i32, i32) {
    %c0_i32 = arith.constant 0 : i32
    %c0_i32_0 = arith.constant 0 : i32
    return %arg0, %c0_i32 : i32, i32
  }
}

module attributes {stable_mosaic.version = 11 : i64} {
  func.func @_t5_cond_kernel(%arg0: i32, %arg1: memref<8x512xbf16, #tpu.memory_space<vmem>>, %arg2: memref<512x128xbf16, #tpu.memory_space<vmem>>, %arg3: memref<1x128xf32, #tpu.memory_space<vmem>>, %arg4: memref<8x1xbf16, #tpu.memory_space<vmem>>, %arg5: memref<8x128xbf16, #tpu.memory_space<vmem>>) attributes {dimension_semantics = [#tpu.dimension_semantics<parallel>], iteration_bounds = array<i64: 2>, scalar_prefetch = 0 : i64, scratch_operands = 0 : i64, tpu.core_type = #tpu.core_type<tc>, window_params = [{transform_indices = @transform_0, window_bounds = array<i64: 8, 512>}, {pipeline_mode = #tpu.pipeline_mode<synchronous>, transform_indices = @transform_1, window_bounds = array<i64: 512, 128>}, {pipeline_mode = #tpu.pipeline_mode<synchronous>, transform_indices = @transform_2, window_bounds = array<i64: 1, 128>}, {transform_indices = @transform_3, window_bounds = array<i64: 8, 1>}, {transform_indices = @transform_4, window_bounds = array<i64: 8, 128>}]} {
    %c0 = arith.constant 0 : index
    %c0_0 = arith.constant 0 : index
    %0 = vector.load %arg1[%c0, %c0_0] : memref<8x512xbf16, #tpu.memory_space<vmem>>, vector<8x512xbf16>
    %c0_1 = arith.constant 0 : index
    %c0_2 = arith.constant 0 : index
    %1 = vector.load %arg2[%c0_1, %c0_2] : memref<512x128xbf16, #tpu.memory_space<vmem>>, vector<512x128xbf16>
    %cst = arith.constant dense<0.000000e+00> : vector<8x128xf32>
    %2 = tpu.matmul %0, %1, %cst {dimension_numbers = #tpu.dot_dimension_numbers<[1], [0], [0], [1], [0, 0, 1, 1], [], []>} : vector<8x512xbf16>, vector<512x128xbf16>, vector<8x128xf32> -> vector<8x128xf32>
    %c0_3 = arith.constant 0 : index
    %c0_4 = arith.constant 0 : index
    %3 = vector.load %arg3[%c0_3, %c0_4] : memref<1x128xf32, #tpu.memory_space<vmem>>, vector<1x128xf32>
    %4 = vector.broadcast %3 : vector<1x128xf32> to vector<8x128xf32>
    %5 = arith.addf %2, %4 : vector<8x128xf32>
    %c0_5 = arith.constant 0 : index
    %c0_6 = arith.constant 0 : index
    %6 = vector.load %arg4[%c0_5, %c0_6] : memref<8x1xbf16, #tpu.memory_space<vmem>>, vector<8x1xbf16>
    %7 = arith.extf %6 : vector<8x1xbf16> to vector<8x1xf32>
    %8 = vector.broadcast %7 : vector<8x1xf32> to vector<8x128xf32>
    %9 = arith.mulf %5, %8 : vector<8x128xf32>
    %10 = arith.truncf %9 : vector<8x128xf32> to vector<8x128xbf16>
    %c0_7 = arith.constant 0 : index
    %c0_8 = arith.constant 0 : index
    %11 = vector.load %arg5[%c0_7, %c0_8] : memref<8x128xbf16, #tpu.memory_space<vmem>>, vector<8x128xbf16>
    tpu.vector_store %arg5[%c0_7, %c0_8], %10 {strides = array<i32>} : memref<8x128xbf16, #tpu.memory_space<vmem>>, vector<8x128xbf16>,
    return
  }
  func.func @transform_0(%arg0: i32) -> (i32, i32) {
    %c0_i32 = arith.constant 0 : i32
    %c0_i32_0 = arith.constant 0 : i32
    return %arg0, %c0_i32 : i32, i32
  }
  func.func @transform_1(%arg0: i32) -> (i32, i32) {
    %c0_i32 = arith.constant 0 : i32
    %c0_i32_0 = arith.constant 0 : i32
    %c0_i32_1 = arith.constant 0 : i32
    return %c0_i32, %c0_i32_0 : i32, i32
  }
  func.func @transform_2(%arg0: i32) -> (i32, i32) {
    %c0_i32 = arith.constant 0 : i32
    %c0_i32_0 = arith.constant 0 : i32
    %c0_i32_1 = arith.constant 0 : i32
    return %c0_i32, %c0_i32_0 : i32, i32
  }
  func.func @transform_3(%arg0: i32) -> (i32, i32) {
    %c0_i32 = arith.constant 0 : i32
    %c0_i32_0 = arith.constant 0 : i32
    return %arg0, %c0_i32 : i32, i32
  }
  func.func @transform_4(%arg0: i32) -> (i32, i32) {
    %c0_i32 = arith.constant 0 : i32
    %c0_i32_0 = arith.constant 0 : i32
    return %arg0, %c0_i32 : i32, i32
  }
}

</mosaic_0001>

<llo_original>
// kernel: tpu_custom_call.1
$region0: #{tpu_custom_call.1}
  #allocation0 [shape = 'u32[]', space=smem, size = 0x4, offset = 0x4, fixed_abs, tag = 'smem constant byte address 0x4 - core index']
  #allocation1 [shape = 'u32[144,128]{1,0:T(1,128)}', space=vmem, size = 0x12000, scoped, tag = 'internal scratch']
  %s0 = inlined_call_operand.hbm [shape: bf16[16,512], index: 0, kind: input, shape index: {}]
  %s1 = inlined_call_operand.hbm [shape: bf16[512,128], index: 1, kind: input, shape index: {}]
  %s2 = inlined_call_operand.vmem [shape: f32[1,128], index: 2, kind: input, shape index: {}]
  %s3 = inlined_call_operand.vmem [shape: bf16[16,1], index: 3, kind: input, shape index: {}]
  %s4 = inlined_call_operand.hbm [shape: bf16[16,128], index: 4, kind: output, shape index: {}]
  %s5 = sld [smem:[#allocation0]]
  $region57: #{tpu_custom_call.1} parent=0
    _
  %s7 = ssub.s32 1, %s5
  %s8 = scalar_select 0, %s7, %s5
  $region1: #{tpu_custom_call.1} parent=0
    #allocation2 [shape = 'u8[16384]{0}', space=vmem, size = 0x4000, scoped, tag = 'input window, operand 0']
    #allocation3 [shape = 's32[2]{0}', space=sflag, size = 0x8, scoped, tag = 'scoped memory for tpu_custom_call.1']
    #allocation4 [shape = 's32[2]{0}', space=sflag, size = 0x8, scoped, tag = 'scoped memory for tpu_custom_call.1']
    #allocation5 [shape = 'u8[131072]{0}', space=vmem, size = 0x20000, scoped, tag = 'input window, operand 1, single buffered']
    #allocation6 [shape = 's32[1]{0}', space=sflag, size = 0x4, scoped, tag = 'scoped memory for tpu_custom_call.1']
    #allocation7 [shape = 'u8[4096]{0}', space=vmem, size = 0x1000, scoped, tag = 'output window, operand 0']
    %9 = vsyncpa [#allocation3], 0
    %s10 = scalar_lea.sflag [#allocation3], 1
    %11 = vsyncpa %s10, 0
    %12 = vsyncpa [#allocation6], 0
    %13 = vsyncpa [#allocation4], 0
    %s14 = scalar_lea.sflag [#allocation4], 1
    %15 = vsyncpa %s14, 0
    loop: start=0, step=1, limit=4
    $region2: #{tpu_custom_call.1} parent=1 // loop_pre_header
      _
    $region3: #{tpu_custom_call.1} parent=1 // loop_header
      %s17 = sphi 0, %s21
      %p18 = scmp.ge.s32.totalorder %s17, 4
      %s27 = sphi 0, %s29
      %s30 = sphi 0, %s27
      %s31 = sphi 0, %s30
      %s47 = sphi 0, %s31
      %s51 = sphi 0, %s51
      %s53 = sphi 0, %s51
      %s54 = sphi 0, %s53
      %s68 = sphi 0, %s54
      %s72 = sphi 0, %s72
      %s74 = sphi 0, %s72
      %s75 = sphi 0, %s74
      %s89 = sphi 0, %s75
      %s95 = sphi 0, %s97
      %s98 = sphi 0, %s95
      %s99 = sphi 0, %s98
      %s115 = sphi 0, %s99
      %s121 = sphi 0, %s123
      %s124 = sphi 0, %s121
      %s125 = sphi 0, %s124
      %s141 = sphi 0, %s125
    $region4: #{tpu_custom_call.1} parent=1 // loop_header_branch
      %20 = sbr.rel (%p18) target = $region8
    $region5: #{tpu_custom_call.1} parent=1 // loop_body
      %s22 = ssub.s32 %s17, 1
      %s23 = ssub.s32 %s17, 2
      %s24 = sadd.s32 %s17, 1
      %s25 = ssub.s32 %s17, %s24
      %p26 = scmp.eq.s32.totalorder %s25, 0
      %s28 = sadd.s32 %s27, 1
      %s29 = scalar_select %p26, %s27, %s28
      %p32 = pneg %p26
      %p33 = scmp.eq.s32.totalorder %s17, 1
      %p34 = por %p32, %p33
      %p35 = scmp.ne.s32.totalorder %s27, %s30
      %p36 = scmp.eq.s32.totalorder %s17, 0
      %p37 = por %p35, %p36
      %p38 = scmp.ne.s32.totalorder %s27, %s30
      %p39 = scmp.eq.s32.totalorder %s22, 1
      %p40 = por %p38, %p39
      %p41 = scmp.ne.s32.totalorder %s30, %s31
      %p42 = scmp.eq.s32.totalorder %s22, 0
      %p43 = por %p41, %p42
      %p44 = scmp.ne.s32.totalorder %s30, %s31
      %p45 = scmp.eq.s32.totalorder %s23, 1
      %p46 = por %p44, %p45
      %p48 = scmp.ne.s32.totalorder %s31, %s47
      %p49 = scmp.eq.s32.totalorder %s23, 0
      %p50 = por %p48, %p49
      %s52 = sadd.s32 %s51, 1
      %p55 = scmp.eq.s32.totalorder %s17, 1
      %p56 = scmp.ne.s32.totalorder %s51, %s53
      %p57 = scmp.eq.s32.totalorder %s17, 0
      %p58 = por %p56, %p57
      %p59 = scmp.ne.s32.totalorder %s51, %s53
      %p60 = scmp.eq.s32.totalorder %s22, 1
      %p61 = por %p59, %p60
      %p62 = scmp.ne.s32.totalorder %s53, %s54
      %p63 = scmp.eq.s32.totalorder %s22, 0
      %p64 = por %p62, %p63
      %p65 = scmp.ne.s32.totalorder %s53, %s54
      %p66 = scmp.eq.s32.totalorder %s23, 1
      %p67 = por %p65, %p66
      %p69 = scmp.ne.s32.totalorder %s54, %s68
      %p70 = scmp.eq.s32.totalorder %s23, 0
      %p71 = por %p69, %p70
      %s73 = sadd.s32 %s72, 1
      %p76 = scmp.eq.s32.totalorder %s17, 1
      %p77 = scmp.ne.s32.totalorder %s72, %s74
      %p78 = scmp.eq.s32.totalorder %s17, 0
      %p79 = por %p77, %p78
      %p80 = scmp.ne.s32.totalorder %s72, %s74
      %p81 = scmp.eq.s32.totalorder %s22, 1
      %p82 = por %p80, %p81
      %p83 = scmp.ne.s32.totalorder %s74, %s75
      %p84 = scmp.eq.s32.totalorder %s22, 0
      %p85 = por %p83, %p84
      %p86 = scmp.ne.s32.totalorder %s74, %s75
      %p87 = scmp.eq.s32.totalorder %s23, 1
      %p88 = por %p86, %p87
      %p90 = scmp.ne.s32.totalorder %s75, %s89
      %p91 = scmp.eq.s32.totalorder %s23, 0
      %p92 = por %p90, %p91
      %s93 = ssub.s32 %s17, %s24
      %p94 = scmp.eq.s32.totalorder %s93, 0
      %s96 = sadd.s32 %s95, 1
      %s97 = scalar_select %p94, %s95, %s96
      %p100 = pneg %p94
      %p101 = scmp.eq.s32.totalorder %s17, 1
      %p102 = por %p100, %p101
      %p103 = scmp.ne.s32.totalorder %s95, %s98
      %p104 = scmp.eq.s32.totalorder %s17, 0
      %p105 = por %p103, %p104
      %p106 = scmp.ne.s32.totalorder %s95, %s98
      %p107 = scmp.eq.s32.totalorder %s22, 1
      %p108 = por %p106, %p107
      %p109 = scmp.ne.s32.totalorder %s98, %s99
      %p110 = scmp.eq.s32.totalorder %s22, 0
      %p111 = por %p109, %p110
      %p112 = scmp.ne.s32.totalorder %s98, %s99
      %p113 = scmp.eq.s32.totalorder %s23, 1
      %p114 = por %p112, %p113
      %p116 = scmp.ne.s32.totalorder %s99, %s115
      %p117 = scmp.eq.s32.totalorder %s23, 0
      %p118 = por %p116, %p117
      %s119 = ssub.s32 %s17, %s24
      %p120 = scmp.eq.s32.totalorder %s119, 0
      %s122 = sadd.s32 %s121, 1
      %s123 = scalar_select %p120, %s121, %s122
      %p126 = pneg %p120
      %p127 = scmp.eq.s32.totalorder %s17, 1
      %p128 = por %p126, %p127
      %p129 = scmp.ne.s32.totalorder %s121, %s124
      %p130 = scmp.eq.s32.totalorder %s17, 0
      %p131 = por %p129, %p130
      %p132 = scmp.ne.s32.totalorder %s121, %s124
      %p133 = scmp.eq.s32.totalorder %s22, 1
      %p134 = por %p132, %p133
      %p135 = scmp.ne.s32.totalorder %s124, %s125
      %p136 = scmp.eq.s32.totalorder %s22, 0
      %p137 = por %p135, %p136
      %p138 = scmp.ne.s32.totalorder %s124, %s125
      %p139 = scmp.eq.s32.totalorder %s23, 1
      %p140 = por %p138, %p139
      %p142 = scmp.ne.s32.totalorder %s125, %s141
      %p143 = scmp.eq.s32.totalorder %s23, 0
      %p144 = por %p142, %p143
      %p145 = scmp.le.s32.totalorder 1, %s17
      %p146 = scmp.lt.s32.totalorder %s17, 3
      %p147 = pnand %p145, %p146
      %p148 = pneg %p147
      // Predicated region
      $region9: #{tpu_custom_call.1} parent=5 // pred_check
        _
      $region10: #{tpu_custom_call.1} parent=5 // pred_check_branch
        %150 = sbr.rel (%p147) target = $region12
      $region11: #{tpu_custom_call.1} parent=5 // pred_region
        %s151 = ssub.s32 %s17, 1
        // Predicated region
        $region13: #{tpu_custom_call.1} parent=11 // pred_check
          %p152 = pneg %p64
        $region14: #{tpu_custom_call.1} parent=11 // pred_check_branch
          %154 = sbr.rel (%p152) target = $region16
        $region15: #{tpu_custom_call.1} parent=11 // pred_region
          %s156 = ssub.s32 4096, 4096
          %157 = vsyncadd [#allocation6], %s156
          %s158 = sshll.u32 [#allocation5], 4
          %s159 = int_to_ptr.vmem [resolvable:$true] %s158
          %164 = dma.hbm_to_vmem [thread:$0]  %s1, 4096, %s159, [#allocation6], 64, 64, 4
        $region16: #{tpu_custom_call.1} parent=11 // pred_fallthru
          _
        // Predicated region
        $region17: #{tpu_custom_call.1} parent=11 // pred_check
          %p165 = pneg %p85
        $region18: #{tpu_custom_call.1} parent=11 // pred_check_branch
          %167 = sbr.rel (%p165) target = $region20
        $region19: #{tpu_custom_call.1} parent=11 // pred_region
          _
        $region20: #{tpu_custom_call.1} parent=11 // pred_fallthru
          _
      $region12: #{tpu_custom_call.1} parent=5 // pred_fallthru
        _
      %p168 = scmp.lt.s32.totalorder %s17, 2
      // Predicated region
      $region21: #{tpu_custom_call.1} parent=5 // pred_check
        %p169 = pneg %p168
      $region22: #{tpu_custom_call.1} parent=5 // pred_check_branch
        %171 = sbr.rel (%p169) target = $region24
      $region23: #{tpu_custom_call.1} parent=5 // pred_region
        // Predicated region
        $region25: #{tpu_custom_call.1} parent=23 // pred_check
          %p172 = pneg %p37
        $region26: #{tpu_custom_call.1} parent=23 // pred_check_branch
          %174 = sbr.rel (%p172) target = $region28
        $region27: #{tpu_custom_call.1} parent=23 // pred_region
          %s175 = sand.u32 %s27, 1
          %s176 = scalar_lea.sflag [#allocation3], %s175
          %s177 = sand.u32 %s27, 1
          %s178 = smul.addr %s177, 16
          %s179 = scalar_lea.vmem [#allocation2], %s178
          %s181 = ssub.s32 256, 256
          %182 = vsyncadd %s176, %s181
          %s183 = smul.addr %s17, 4
          %s184 = smul.addr %s183, 64
          %s185 = scalar_lea.hbm %s0, %s184
          %s187 = sshll.u32 %s179, 4
          %s188 = int_to_ptr.vmem [resolvable:$true] %s187
          %190 = dma.hbm_to_vmem [thread:$0]  %s185, 256, %s188, %s176
        $region28: #{tpu_custom_call.1} parent=23 // pred_fallthru
          _
        // Predicated region
        $region29: #{tpu_custom_call.1} parent=23 // pred_check
          %p191 = pneg %p105
        $region30: #{tpu_custom_call.1} parent=23 // pred_check_branch
          %193 = sbr.rel (%p191) target = $region32
        $region31: #{tpu_custom_call.1} parent=23 // pred_region
          %p194 = scmp.lt.s32.totalorder %s17, 1
          %s195 = scalar_select %p194, %s17, 1
          %s196 = smul.addr %s195, 4
          %s197 = scalar_lea.vmem %s3, %s196
        $region32: #{tpu_custom_call.1} parent=23 // pred_fallthru
          _
      $region24: #{tpu_custom_call.1} parent=5 // pred_fallthru
        _
      %p198 = scmp.le.s32.totalorder 1, %s17
      %p199 = scmp.lt.s32.totalorder %s17, 3
      %p200 = pnand %p198, %p199
      %p201 = pneg %p200
      // Predicated region
      $region33: #{tpu_custom_call.1} parent=5 // pred_check
        _
      $region34: #{tpu_custom_call.1} parent=5 // pred_check_branch
        %203 = sbr.rel (%p200) target = $region36
      $region35: #{tpu_custom_call.1} parent=5 // pred_region
        %s204 = ssub.s32 %s17, 1
        %s205 = sand.u32 %s30, 1
        %s206 = scalar_lea.sflag [#allocation3], %s205
        %s207 = sand.u32 %s30, 1
        %s208 = smul.addr %s207, 16
        %s209 = scalar_lea.vmem [#allocation2], %s208
        // Predicated region
        $region37: #{tpu_custom_call.1} parent=35 // pred_check
          %p210 = pneg %p43
        $region38: #{tpu_custom_call.1} parent=35 // pred_check_branch
          %212 = sbr.rel (%p210) target = $region40
        $region39: #{tpu_custom_call.1} parent=35 // pred_region
          %213 = dma.done %s206, 256
        $region40: #{tpu_custom_call.1} parent=35 // pred_fallthru
          _
        // Predicated region
        $region41: #{tpu_custom_call.1} parent=35 // pred_check
          %p214 = pneg %p64
        $region42: #{tpu_custom_call.1} parent=35 // pred_check_branch
          %216 = sbr.rel (%p214) target = $region44
        $region43: #{tpu_custom_call.1} parent=35 // pred_region
          %217 = dma.done [#allocation6], 4096
        $region44: #{tpu_custom_call.1} parent=35 // pred_fallthru
          _
        %s218 = sand.u32 %s30, 1
        %s219 = scalar_lea.sflag [#allocation3], %s218
        %s220 = sand.u32 %s30, 1
        %s221 = smul.addr %s220, 16
        %s222 = scalar_lea.vmem [#allocation2], %s221
        %p223 = pneg %p43
        %p224 = pneg %p40
        %p225 = pneg %p64
        %p226 = pneg %p61
        %p227 = pneg %p85
        %p228 = pneg %p82
        %p229 = scmp.lt.s32.totalorder %s22, 1
        %s230 = scalar_select %p229, %s22, 1
        %s231 = smul.addr %s230, 4
        %s232 = scalar_lea.vmem %s3, %s231
        %p233 = pneg %p111
        %p234 = pneg %p108
        %p235 = pneg %p137
        %p236 = pneg %p134
        %s237 = sand.u32 %s124, 1
        %s238 = scalar_lea.sflag [#allocation4], %s237
        %s239 = sand.u32 %s124, 1
        %s240 = smul.addr %s239, 4
        %s241 = scalar_lea.vmem [#allocation7], %s240
        %p242 = scmp.lt.s32.totalorder %s22, 1
        %s243 = scalar_select %p242, %s22, 1
        %s244 = smul.addr %s243, 4
        %s245 = scalar_lea.vmem %s3, %s244
        %v247 = vld [vmem:[%s209] sm:$0xff]
        %v248 = vld [vmem:[%s209 + $0x8] sm:$0xff]
        %v249 = vld [vmem:[#allocation5] sm:$0xf]
        %v250 = vld [vmem:[#allocation5 + $0x4] sm:$0xf]
        %v251 = vld [vmem:[#allocation5 + $0x8] sm:$0xf]
        %v252 = vld [vmem:[#allocation5 + $0xc] sm:$0xf]
        %v253 = vld [vmem:[#allocation5 + $0x10] sm:$0xf]
        %v254 = vld [vmem:[#allocation5 + $0x14] sm:$0xf]
        %v255 = vld [vmem:[#allocation5 + $0x18] sm:$0xf]
        %v256 = vld [vmem:[#allocation5 + $0x1c] sm:$0xf]
        %v257 = vld [vmem:[#allocation5 + $0x20] sm:$0xf]
        %v258 = vld [vmem:[#allocation5 + $0x24] sm:$0xf]
        %v259 = vld [vmem:[#allocation5 + $0x28] sm:$0xf]
        %v260 = vld [vmem:[#allocation5 + $0x2c] sm:$0xf]
        %v261 = vld [vmem:[#allocation5 + $0x30] sm:$0xf]
        %v262 = vld [vmem:[#allocation5 + $0x34] sm:$0xf]
        %v263 = vld [vmem:[#allocation5 + $0x38] sm:$0xf]
        %v264 = vld [vmem:[#allocation5 + $0x3c] sm:$0xf]
        %v265 = vld [vmem:[#allocation5 + $0x40] sm:$0xf]
        %v266 = vld [vmem:[#allocation5 + $0x44] sm:$0xf]
        %v267 = vld [vmem:[#allocation5 + $0x48] sm:$0xf]
        %v268 = vld [vmem:[#allocation5 + $0x4c] sm:$0xf]
        %v269 = vld [vmem:[#allocation5 + $0x50] sm:$0xf]
        %v270 = vld [vmem:[#allocation5 + $0x54] sm:$0xf]
        %v271 = vld [vmem:[#allocation5 + $0x58] sm:$0xf]
        %v272 = vld [vmem:[#allocation5 + $0x5c] sm:$0xf]
        %v273 = vld [vmem:[#allocation5 + $0x60] sm:$0xf]
        %v274 = vld [vmem:[#allocation5 + $0x64] sm:$0xf]
        %v275 = vld [vmem:[#allocation5 + $0x68] sm:$0xf]
        %v276 = vld [vmem:[#allocation5 + $0x6c] sm:$0xf]
        %v277 = vld [vmem:[#allocation5 + $0x70] sm:$0xf]
        %v278 = vld [vmem:[#allocation5 + $0x74] sm:$0xf]
        %v279 = vld [vmem:[#allocation5 + $0x78] sm:$0xf]
        %v280 = vld [vmem:[#allocation5 + $0x7c] sm:$0xf]
        %v281 = vld [vmem:[#allocation5 + $0x80] sm:$0xf]
        %v282 = vld [vmem:[#allocation5 + $0x84] sm:$0xf]
        %v283 = vld [vmem:[#allocation5 + $0x88] sm:$0xf]
        %v284 = vld [vmem:[#allocation5 + $0x8c] sm:$0xf]
        %v285 = vld [vmem:[#allocation5 + $0x90] sm:$0xf]
        %v286 = vld [vmem:[#allocation5 + $0x94] sm:$0xf]
        %v287 = vld [vmem:[#allocation5 + $0x98] sm:$0xf]
        %v288 = vld [vmem:[#allocation5 + $0x9c] sm:$0xf]
        %v289 = vld [vmem:[#allocation5 + $0xa0] sm:$0xf]
        %v290 = vld [vmem:[#allocation5 + $0xa4] sm:$0xf]
        %v291 = vld [vmem:[#allocation5 + $0xa8] sm:$0xf]
        %v292 = vld [vmem:[#allocation5 + $0xac] sm:$0xf]
        %v293 = vld [vmem:[#allocation5 + $0xb0] sm:$0xf]
        %v294 = vld [vmem:[#allocation5 + $0xb4] sm:$0xf]
        %v295 = vld [vmem:[#allocation5 + $0xb8] sm:$0xf]
        %v296 = vld [vmem:[#allocation5 + $0xbc] sm:$0xf]
        %v297 = vld [vmem:[#allocation5 + $0xc0] sm:$0xf]
        %v298 = vld [vmem:[#allocation5 + $0xc4] sm:$0xf]
        %v299 = vld [vmem:[#allocation5 + $0xc8] sm:$0xf]
        %v300 = vld [vmem:[#allocation5 + $0xcc] sm:$0xf]
        %v301 = vld [vmem:[#allocation5 + $0xd0] sm:$0xf]
        %v302 = vld [vmem:[#allocation5 + $0xd4] sm:$0xf]
        %v303 = vld [vmem:[#allocation5 + $0xd8] sm:$0xf]
        %v304 = vld [vmem:[#allocation5 + $0xdc] sm:$0xf]
        %v305 = vld [vmem:[#allocation5 + $0xe0] sm:$0xf]
        %v306 = vld [vmem:[#allocation5 + $0xe4] sm:$0xf]
        %v307 = vld [vmem:[#allocation5 + $0xe8] sm:$0xf]
        %v308 = vld [vmem:[#allocation5 + $0xec] sm:$0xf]
        %v309 = vld [vmem:[#allocation5 + $0xf0] sm:$0xf]
        %v310 = vld [vmem:[#allocation5 + $0xf4] sm:$0xf]
        %v311 = vld [vmem:[#allocation5 + $0xf8] sm:$0xf]
        %v312 = vld [vmem:[#allocation5 + $0xfc] sm:$0xf]
        %v313 = vld [vmem:[%s2] sm:$0x1]
        %v315 = vlaneseq
        %v316 = vshrl.u32 %v315, 7
        %v317 = vsub.s32 0, %v316
        %v318 = vrot.slane %v313, %v317
        %v322 = vunpack.c.l.b16 %v247
        %v323 = vunpack.c.h.b16 %v247
        %v324 = vunpack.c.l.b16 %v248
        %v325 = vunpack.c.h.b16 %v248
        %v326 = vpack.c.b16 %v322, %v322
        %v327 = vpack.c.b16 %v323, %v323
        %v328 = vpack.c.b16 %v324, %v324
        %v329 = vpack.c.b16 %v325, %v325
        %v398 = vunpack.c.l.b16 %v249
        %v399 = vunpack.c.l.b16 %v250
        %v400 = vunpack.c.l.b16 %v251
        %v401 = vunpack.c.l.b16 %v252
        %v402 = vunpack.c.l.b16 %v253
        %v403 = vunpack.c.l.b16 %v254
        %v404 = vunpack.c.l.b16 %v255
        %v405 = vunpack.c.l.b16 %v256
        %v406 = vunpack.c.l.b16 %v257
        %v407 = vunpack.c.l.b16 %v258
        %v408 = vunpack.c.l.b16 %v259
        %v409 = vunpack.c.l.b16 %v260
        %v410 = vunpack.c.l.b16 %v261
        %v411 = vunpack.c.l.b16 %v262
        %v412 = vunpack.c.l.b16 %v263
        %v413 = vunpack.c.l.b16 %v264
        %v414 = vunpack.c.l.b16 %v265
        %v415 = vunpack.c.l.b16 %v266
        %v416 = vunpack.c.l.b16 %v267
        %v417 = vunpack.c.l.b16 %v268
        %v418 = vunpack.c.l.b16 %v269
        %v419 = vunpack.c.l.b16 %v270
        %v420 = vunpack.c.l.b16 %v271
        %v421 = vunpack.c.l.b16 %v272
        %v422 = vunpack.c.l.b16 %v273
        %v423 = vunpack.c.l.b16 %v274
        %v424 = vunpack.c.l.b16 %v275
        %v425 = vunpack.c.l.b16 %v276
        %v426 = vunpack.c.l.b16 %v277
        %v427 = vunpack.c.l.b16 %v278
        %v428 = vunpack.c.l.b16 %v279
        %v429 = vunpack.c.l.b16 %v280
        %v430 = vunpack.c.l.b16 %v281
        %v431 = vunpack.c.l.b16 %v282
        %v432 = vunpack.c.l.b16 %v283
        %v433 = vunpack.c.l.b16 %v284
        %v434 = vunpack.c.l.b16 %v285
        %v435 = vunpack.c.l.b16 %v286
        %v436 = vunpack.c.l.b16 %v287
        %v437 = vunpack.c.l.b16 %v288
        %v438 = vunpack.c.l.b16 %v289
        %v439 = vunpack.c.l.b16 %v290
        %v440 = vunpack.c.l.b16 %v291
        %v441 = vunpack.c.l.b16 %v292
        %v442 = vunpack.c.l.b16 %v293
        %v443 = vunpack.c.l.b16 %v294
        %v444 = vunpack.c.l.b16 %v295
        %v445 = vunpack.c.l.b16 %v296
        %v446 = vunpack.c.l.b16 %v297
        %v447 = vunpack.c.l.b16 %v298
        %v448 = vunpack.c.l.b16 %v299
        %v449 = vunpack.c.l.b16 %v300
        %v450 = vunpack.c.l.b16 %v301
        %v451 = vunpack.c.l.b16 %v302
        %v452 = vunpack.c.l.b16 %v303
        %v453 = vunpack.c.l.b16 %v304
        %v454 = vunpack.c.l.b16 %v305
        %v455 = vunpack.c.l.b16 %v306
        %v456 = vunpack.c.l.b16 %v307
        %v457 = vunpack.c.l.b16 %v308
        %v458 = vunpack.c.l.b16 %v309
        %v459 = vunpack.c.l.b16 %v310
        %v460 = vunpack.c.l.b16 %v311
        %v461 = vunpack.c.l.b16 %v312
        %v462 = vpack.c.b16 %v399, %v398
        %v463 = vpack.c.b16 %v401, %v400
        %v464 = vpack.c.b16 %v403, %v402
        %v465 = vpack.c.b16 %v405, %v404
        %v466 = vpack.c.b16 %v407, %v406
        %v467 = vpack.c.b16 %v409, %v408
        %v468 = vpack.c.b16 %v411, %v410
        %v469 = vpack.c.b16 %v413, %v412
        %v470 = vpack.c.b16 %v415, %v414
        %v471 = vpack.c.b16 %v417, %v416
        %v472 = vpack.c.b16 %v419, %v418
        %v473 = vpack.c.b16 %v421, %v420
        %v474 = vpack.c.b16 %v423, %v422
        %v475 = vpack.c.b16 %v425, %v424
        %v476 = vpack.c.b16 %v427, %v426
        %v477 = vpack.c.b16 %v429, %v428
        %v478 = vpack.c.b16 %v431, %v430
        %v479 = vpack.c.b16 %v433, %v432
        %v480 = vpack.c.b16 %v435, %v434
        %v481 = vpack.c.b16 %v437, %v436
        %v482 = vpack.c.b16 %v439, %v438
        %v483 = vpack.c.b16 %v441, %v440
        %v484 = vpack.c.b16 %v443, %v442
        %v485 = vpack.c.b16 %v445, %v444
        %v486 = vpack.c.b16 %v447, %v446
        %v487 = vpack.c.b16 %v449, %v448
        %v488 = vpack.c.b16 %v451, %v450
        %v489 = vpack.c.b16 %v453, %v452
        %v490 = vpack.c.b16 %v455, %v454
        %v491 = vpack.c.b16 %v457, %v456
        %v492 = vpack.c.b16 %v459, %v458
        %v493 = vpack.c.b16 %v461, %v460
        %526 = vmatprep.subr.bf16.mxu0 0
        %527 = vmatpush1.bf16.msra.mxu0 %v462
        %528 = vmatprep.subr.bf16.mxu0 0
        %529 = vmatpush1.bf16.msra.mxu0 %v463
        %530 = vmatprep.subr.bf16.mxu0 0
        %531 = vmatpush1.bf16.msra.mxu0 %v464
        %532 = vmatprep.subr.bf16.mxu0 0
        %533 = vmatpush1.bf16.msra.mxu0 %v465
        %534 = vmatprep.subr.bf16.mxu0 0
        %535 = vmatpush1.bf16.msra.mxu0 %v466
        %536 = vmatprep.subr.bf16.mxu0 0
        %537 = vmatpush1.bf16.msra.mxu0 %v467
        %538 = vmatprep.subr.bf16.mxu0 0
        %539 = vmatpush1.bf16.msra.mxu0 %v468
        %540 = vmatprep.subr.bf16.mxu0 0
        %541 = vmatpush1.bf16.msra.mxu0 %v469
        %542 = vmatprep.subr.bf16.mxu0 0
        %543 = vmatpush1.bf16.msra.mxu0 %v470
        %544 = vmatprep.subr.bf16.mxu0 0
        %545 = vmatpush1.bf16.msra.mxu0 %v471
        %546 = vmatprep.subr.bf16.mxu0 0
        %547 = vmatpush1.bf16.msra.mxu0 %v472
        %548 = vmatprep.subr.bf16.mxu0 0
        %549 = vmatpush1.bf16.msra.mxu0 %v473
        %550 = vmatprep.subr.bf16.mxu0 0
        %551 = vmatpush1.bf16.msra.mxu0 %v474
        %552 = vmatprep.subr.bf16.mxu0 0
        %553 = vmatpush1.bf16.msra.mxu0 %v475
        %554 = vmatprep.subr.bf16.mxu0 0
        %555 = vmatpush1.bf16.msra.mxu0 %v476
        %556 = vmatprep.subr.bf16.mxu0 0
        %557 = vmatpush1.bf16.msra.mxu0 %v477
        %558 = vmatprep.mubr.bf16.mxu0 %v327
        %559 = vmatmul.mubr.bf16.gmra.mrb[0].mxu0 %v326
        %v560 = vpop.f32.mrb[0].mxu0
        %v561 = vadd.f32 %v318, %v560
        %v562 = vpop.f32.mrb[0].mxu0
        %v563 = vpop.f32.mrb[0].mxu0
        %v564 = vpop.f32.mrb[0].mxu0
        %565 = vdwg.mxu0
        %566 = vmatprep.subr.bf16.mxu0 0
        %567 = vmatpush1.bf16.msra.mxu0 %v478
        %568 = vmatprep.subr.bf16.mxu0 0
        %569 = vmatpush1.bf16.msra.mxu0 %v479
        %570 = vmatprep.subr.bf16.mxu0 0
        %571 = vmatpush1.bf16.msra.mxu0 %v480
        %572 = vmatprep.subr.bf16.mxu0 0
        %573 = vmatpush1.bf16.msra.mxu0 %v481
        %574 = vmatprep.subr.bf16.mxu0 0
        %575 = vmatpush1.bf16.msra.mxu0 %v482
        %576 = vmatprep.subr.bf16.mxu0 0
        %577 = vmatpush1.bf16.msra.mxu0 %v483
        %578 = vmatprep.subr.bf16.mxu0 0
        %579 = vmatpush1.bf16.msra.mxu0 %v484
        %580 = vmatprep.subr.bf16.mxu0 0
        %581 = vmatpush1.bf16.msra.mxu0 %v485
        %582 = vmatprep.subr.bf16.mxu0 0
        %583 = vmatpush1.bf16.msra.mxu0 %v486
        %584 = vmatprep.subr.bf16.mxu0 0
        %585 = vmatpush1.bf16.msra.mxu0 %v487
        %586 = vmatprep.subr.bf16.mxu0 0
        %587 = vmatpush1.bf16.msra.mxu0 %v488
        %588 = vmatprep.subr.bf16.mxu0 0
        %589 = vmatpush1.bf16.msra.mxu0 %v489
        %590 = vmatprep.subr.bf16.mxu0 0
        %591 = vmatpush1.bf16.msra.mxu0 %v490
        %592 = vmatprep.subr.bf16.mxu0 0
        %593 = vmatpush1.bf16.msra.mxu0 %v491
        %594 = vmatprep.subr.bf16.mxu0 0
        %595 = vmatpush1.bf16.msra.mxu0 %v492
        %596 = vmatprep.subr.bf16.mxu0 0
        %597 = vmatpush1.bf16.msra.mxu0 %v493
        %598 = vmatprep.mubr.bf16.mxu0 %v329
        %599 = vmatmul.mubr.bf16.gmra.mrb[0].mxu0 %v328
        %v600 = vpop.f32.mrb[0].mxu0
        %v601 = vadd.f32 %v561, %v600
        %v602 = vpop.f32.mrb[0].mxu0
        %v603 = vpop.f32.mrb[0].mxu0
        %v604 = vpop.f32.mrb[0].mxu0
        %605 = vdwg.mxu0
        %v606 = vld [vmem:[%s245] sm:$0xf]
        %v607 = vunpack.c.l.bf16 %v606
        %609 = vset.pattern.permute.xlu0 0
        %610 = vperm.xlu0 %609, %v607
        %v611 = vpop.permute.xlu0 %610
        %v613 = vmul.f32 %v601, %v611
        %v614 = vpack.c.bf16 %v613, %v613
        %615 = vst [vmem:[%s241] sm:$0xf] %v614
        %s616 = sand.u32 %s124, 1
        %s617 = scalar_lea.sflag [#allocation4], %s616
        %s618 = sand.u32 %s124, 1
        %s619 = smul.addr %s618, 4
        %s620 = scalar_lea.vmem [#allocation7], %s619
        // Predicated region
        $region45: #{tpu_custom_call.1} parent=35 // pred_check
          %p621 = pneg %p134
        $region46: #{tpu_custom_call.1} parent=35 // pred_check_branch
          %623 = sbr.rel (%p621) target = $region48
        $region47: #{tpu_custom_call.1} parent=35 // pred_region
          %s625 = ssub.s32 64, 64
          %626 = vsyncadd %s617, %s625
          %s627 = smul.addr %s22, 64
          %s628 = scalar_lea.hbm %s4, %s627
          %s630 = sshll.u32 %s620, 4
          %s631 = int_to_ptr.vmem [resolvable:$true] %s630
          %633 = dma.vmem_to_hbm [thread:$0]  %s631, 64, %s628, %s617
        $region48: #{tpu_custom_call.1} parent=35 // pred_fallthru
          _
      $region36: #{tpu_custom_call.1} parent=5 // pred_fallthru
        _
      %p634 = scmp.le.s32.totalorder 2, %s17
      // Predicated region
      $region49: #{tpu_custom_call.1} parent=5 // pred_check
        %p635 = pneg %p634
      $region50: #{tpu_custom_call.1} parent=5 // pred_check_branch
        %637 = sbr.rel (%p635) target = $region52
      $region51: #{tpu_custom_call.1} parent=5 // pred_region
        %s638 = ssub.s32 %s17, 2
        // Predicated region
        $region53: #{tpu_custom_call.1} parent=51 // pred_check
          %p639 = pneg %p140
        $region54: #{tpu_custom_call.1} parent=51 // pred_check_branch
          %641 = sbr.rel (%p639) target = $region56
        $region55: #{tpu_custom_call.1} parent=51 // pred_region
          %s642 = sand.u32 %s125, 1
          %s643 = scalar_lea.sflag [#allocation4], %s642
          %s644 = sand.u32 %s125, 1
          %s645 = smul.addr %s644, 4
          %s646 = scalar_lea.vmem [#allocation7], %s645
          %647 = dma.done %s643, 64
        $region56: #{tpu_custom_call.1} parent=51 // pred_fallthru
          _
      $region52: #{tpu_custom_call.1} parent=5 // pred_fallthru
        _
    $region6: #{tpu_custom_call.1} parent=1 // loop_footer
      %s21 = sadd.s32 1, %s17
    $region7: #{tpu_custom_call.1} parent=1 // loop_footer_branch
      %16 = sbr.rel target = $region3
    $region8: #{tpu_custom_call.1} parent=1 // loop_exit
      _
    %648 = vsyncpa [#allocation3], 1
    %s649 = scalar_lea.sflag [#allocation3], 1
    %650 = vsyncpa %s649, 1
    %651 = vsyncpa [#allocation6], 1
    %652 = vsyncpa [#allocation4], 1
    %s653 = scalar_lea.sflag [#allocation4], 1
    %654 = vsyncpa %s653, 1

// kernel: tpu_custom_call.1
$region0: #{tpu_custom_call.1}
  #allocation0 [shape = 'u32[]', space=smem, size = 0x4, offset = 0x4, fixed_abs, tag = 'smem constant byte address 0x4 - core index']
  #allocation1 [shape = 'u32[144,128]{1,0:T(1,128)}', space=vmem, size = 0x12000, scoped, tag = 'internal scratch']
  %s0 = inlined_call_operand.hbm [shape: bf16[16,512], index: 0, kind: input, shape index: {}]
  %s1 = inlined_call_operand.hbm [shape: bf16[512,128], index: 1, kind: input, shape index: {}]
  %s2 = inlined_call_operand.vmem [shape: f32[1,128], index: 2, kind: input, shape index: {}]
  %s3 = inlined_call_operand.vmem [shape: bf16[16,1], index: 3, kind: input, shape index: {}]
  %s4 = inlined_call_operand.hbm [shape: bf16[16,128], index: 4, kind: output, shape index: {}]
  %s5 = sld [smem:[#allocation0]]
  $region57: #{tpu_custom_call.1} parent=0
    _
  %s7 = ssub.s32 1, %s5
  %s8 = scalar_select 0, %s7, %s5
  $region1: #{tpu_custom_call.1} parent=0
    #allocation2 [shape = 'u8[16384]{0}', space=vmem, size = 0x4000, scoped, tag = 'input window, operand 0']
    #allocation3 [shape = 's32[2]{0}', space=sflag, size = 0x8, scoped, tag = 'scoped memory for tpu_custom_call.1']
    #allocation4 [shape = 's32[2]{0}', space=sflag, size = 0x8, scoped, tag = 'scoped memory for tpu_custom_call.1']
    #allocation5 [shape = 'u8[131072]{0}', space=vmem, size = 0x20000, scoped, tag = 'input window, operand 1, single buffered']
    #allocation6 [shape = 's32[1]{0}', space=sflag, size = 0x4, scoped, tag = 'scoped memory for tpu_custom_call.1']
    #allocation7 [shape = 'u8[4096]{0}', space=vmem, size = 0x1000, scoped, tag = 'output window, operand 0']
    %9 = vsyncpa [#allocation3], 0
    %s10 = scalar_lea.sflag [#allocation3], 1
    %11 = vsyncpa %s10, 0
    %12 = vsyncpa [#allocation6], 0
    %13 = vsyncpa [#allocation4], 0
    %s14 = scalar_lea.sflag [#allocation4], 1
    %15 = vsyncpa %s14, 0
    loop: start=0, step=1, limit=4
    $region2: #{tpu_custom_call.1} parent=1 // loop_pre_header
      _
    $region3: #{tpu_custom_call.1} parent=1 // loop_header
      %s17 = sphi 0, %s21
      %p18 = scmp.ge.s32.totalorder %s17, 4
      %s27 = sphi 0, %s29
      %s30 = sphi 0, %s27
      %s31 = sphi 0, %s30
      %s47 = sphi 0, %s31
      %s51 = sphi 0, %s51
      %s53 = sphi 0, %s51
      %s54 = sphi 0, %s53
      %s68 = sphi 0, %s54
      %s72 = sphi 0, %s72
      %s74 = sphi 0, %s72
      %s75 = sphi 0, %s74
      %s89 = sphi 0, %s75
      %s95 = sphi 0, %s97
      %s98 = sphi 0, %s95
      %s99 = sphi 0, %s98
      %s115 = sphi 0, %s99
      %s121 = sphi 0, %s123
      %s124 = sphi 0, %s121
      %s125 = sphi 0, %s124
      %s141 = sphi 0, %s125
    $region4: #{tpu_custom_call.1} parent=1 // loop_header_branch
      %20 = sbr.rel (%p18) target = $region8
    $region5: #{tpu_custom_call.1} parent=1 // loop_body
      %s22 = ssub.s32 %s17, 1
      %s23 = ssub.s32 %s17, 2
      %s24 = sadd.s32 %s17, 1
      %s25 = ssub.s32 %s17, %s24
      %p26 = scmp.eq.s32.totalorder %s25, 0
      %s28 = sadd.s32 %s27, 1
      %s29 = scalar_select %p26, %s27, %s28
      %p32 = pneg %p26
      %p33 = scmp.eq.s32.totalorder %s17, 1
      %p34 = por %p32, %p33
      %p35 = scmp.ne.s32.totalorder %s27, %s30
      %p36 = scmp.eq.s32.totalorder %s17, 0
      %p37 = por %p35, %p36
      %p38 = scmp.ne.s32.totalorder %s27, %s30
      %p39 = scmp.eq.s32.totalorder %s22, 1
      %p40 = por %p38, %p39
      %p41 = scmp.ne.s32.totalorder %s30, %s31
      %p42 = scmp.eq.s32.totalorder %s22, 0
      %p43 = por %p41, %p42
      %p44 = scmp.ne.s32.totalorder %s30, %s31
      %p45 = scmp.eq.s32.totalorder %s23, 1
      %p46 = por %p44, %p45
      %p48 = scmp.ne.s32.totalorder %s31, %s47
      %p49 = scmp.eq.s32.totalorder %s23, 0
      %p50 = por %p48, %p49
      %s52 = sadd.s32 %s51, 1
      %p55 = scmp.eq.s32.totalorder %s17, 1
      %p56 = scmp.ne.s32.totalorder %s51, %s53
      %p57 = scmp.eq.s32.totalorder %s17, 0
      %p58 = por %p56, %p57
      %p59 = scmp.ne.s32.totalorder %s51, %s53
      %p60 = scmp.eq.s32.totalorder %s22, 1
      %p61 = por %p59, %p60
      %p62 = scmp.ne.s32.totalorder %s53, %s54
      %p63 = scmp.eq.s32.totalorder %s22, 0
      %p64 = por %p62, %p63
      %p65 = scmp.ne.s32.totalorder %s53, %s54
      %p66 = scmp.eq.s32.totalorder %s23, 1
      %p67 = por %p65, %p66
      %p69 = scmp.ne.s32.totalorder %s54, %s68
      %p70 = scmp.eq.s32.totalorder %s23, 0
      %p71 = por %p69, %p70
      %s73 = sadd.s32 %s72, 1
      %p76 = scmp.eq.s32.totalorder %s17, 1
      %p77 = scmp.ne.s32.totalorder %s72, %s74
      %p78 = scmp.eq.s32.totalorder %s17, 0
      %p79 = por %p77, %p78
      %p80 = scmp.ne.s32.totalorder %s72, %s74
      %p81 = scmp.eq.s32.totalorder %s22, 1
      %p82 = por %p80, %p81
      %p83 = scmp.ne.s32.totalorder %s74, %s75
      %p84 = scmp.eq.s32.totalorder %s22, 0
      %p85 = por %p83, %p84
      %p86 = scmp.ne.s32.totalorder %s74, %s75
      %p87 = scmp.eq.s32.totalorder %s23, 1
      %p88 = por %p86, %p87
      %p90 = scmp.ne.s32.totalorder %s75, %s89
      %p91 = scmp.eq.s32.totalorder %s23, 0
      %p92 = por %p90, %p91
      %s93 = ssub.s32 %s17, %s24
      %p94 = scmp.eq.s32.totalorder %s93, 0
      %s96 = sadd.s32 %s95, 1
      %s97 = scalar_select %p94, %s95, %s96
      %p100 = pneg %p94
      %p101 = scmp.eq.s32.totalorder %s17, 1
      %p102 = por %p100, %p101
      %p103 = scmp.ne.s32.totalorder %s95, %s98
      %p104 = scmp.eq.s32.totalorder %s17, 0
      %p105 = por %p103, %p104
      %p106 = scmp.ne.s32.totalorder %s95, %s98
      %p107 = scmp.eq.s32.totalorder %s22, 1
      %p108 = por %p106, %p107
      %p109 = scmp.ne.s32.totalorder %s98, %s99
      %p110 = scmp.eq.s32.totalorder %s22, 0
      %p111 = por %p109, %p110
      %p112 = scmp.ne.s32.totalorder %s98, %s99
      %p113 = scmp.eq.s32.totalorder %s23, 1
      %p114 = por %p112, %p113
      %p116 = scmp.ne.s32.totalorder %s99, %s115
      %p117 = scmp.eq.s32.totalorder %s23, 0
      %p118 = por %p116, %p117
      %s119 = ssub.s32 %s17, %s24
      %p120 = scmp.eq.s32.totalorder %s119, 0
      %s122 = sadd.s32 %s121, 1
      %s123 = scalar_select %p120, %s121, %s122
      %p126 = pneg %p120
      %p127 = scmp.eq.s32.totalorder %s17, 1
      %p128 = por %p126, %p127
      %p129 = scmp.ne.s32.totalorder %s121, %s124
      %p130 = scmp.eq.s32.totalorder %s17, 0
      %p131 = por %p129, %p130
      %p132 = scmp.ne.s32.totalorder %s121, %s124
      %p133 = scmp.eq.s32.totalorder %s22, 1
      %p134 = por %p132, %p133
      %p135 = scmp.ne.s32.totalorder %s124, %s125
      %p136 = scmp.eq.s32.totalorder %s22, 0
      %p137 = por %p135, %p136
      %p138 = scmp.ne.s32.totalorder %s124, %s125
      %p139 = scmp.eq.s32.totalorder %s23, 1
      %p140 = por %p138, %p139
      %p142 = scmp.ne.s32.totalorder %s125, %s141
      %p143 = scmp.eq.s32.totalorder %s23, 0
      %p144 = por %p142, %p143
      %p145 = scmp.le.s32.totalorder 1, %s17
      %p146 = scmp.lt.s32.totalorder %s17, 3
      %p147 = pnand %p145, %p146
      %p148 = pneg %p147
      // Predicated region
      $region9: #{tpu_custom_call.1} parent=5 // pred_check
        _
      $region10: #{tpu_custom_call.1} parent=5 // pred_check_branch
        %150 = sbr.rel (%p147) target = $region12
      $region11: #{tpu_custom_call.1} parent=5 // pred_region
        %s151 = ssub.s32 %s17, 1
        // Predicated region
        $region13: #{tpu_custom_call.1} parent=11 // pred_check
          %p152 = pneg %p64
        $region14: #{tpu_custom_call.1} parent=11 // pred_check_branch
          %154 = sbr.rel (%p152) target = $region16
        $region15: #{tpu_custom_call.1} parent=11 // pred_region
          %s156 = ssub.s32 4096, 4096
          %157 = vsyncadd [#allocation6], %s156
          %s158 = sshll.u32 [#allocation5], 4
          %s159 = int_to_ptr.vmem [resolvable:$true] %s158
          %164 = dma.hbm_to_vmem [thread:$0]  %s1, 4096, %s159, [#allocation6], 64, 64, 4
        $region16: #{tpu_custom_call.1} parent=11 // pred_fallthru
          _
        // Predicated region
        $region17: #{tpu_custom_call.1} parent=11 // pred_check
          %p165 = pneg %p85
        $region18: #{tpu_custom_call.1} parent=11 // pred_check_branch
          %167 = sbr.rel (%p165) target = $region20
        $region19: #{tpu_custom_call.1} parent=11 // pred_region
          _
        $region20: #{tpu_custom_call.1} parent=11 // pred_fallthru
          _
      $region12: #{tpu_custom_call.1} parent=5 // pred_fallthru
        _
      %p168 = scmp.lt.s32.totalorder %s17, 2
      // Predicated region
      $region21: #{tpu_custom_call.1} parent=5 // pred_check
        %p169 = pneg %p168
      $region22: #{tpu_custom_call.1} parent=5 // pred_check_branch
        %171 = sbr.rel (%p169) target = $region24
      $region23: #{tpu_custom_call.1} parent=5 // pred_region
        // Predicated region
        $region25: #{tpu_custom_call.1} parent=23 // pred_check
          %p172 = pneg %p37
        $region26: #{tpu_custom_call.1} parent=23 // pred_check_branch
          %174 = sbr.rel (%p172) target = $region28
        $region27: #{tpu_custom_call.1} parent=23 // pred_region
          %s175 = sand.u32 %s27, 1
          %s176 = scalar_lea.sflag [#allocation3], %s175
          %s177 = sand.u32 %s27, 1
          %s178 = smul.addr %s177, 16
          %s179 = scalar_lea.vmem [#allocation2], %s178
          %s181 = ssub.s32 256, 256
          %182 = vsyncadd %s176, %s181
          %s183 = smul.addr %s17, 4
          %s184 = smul.addr %s183, 64
          %s185 = scalar_lea.hbm %s0, %s184
          %s187 = sshll.u32 %s179, 4
          %s188 = int_to_ptr.vmem [resolvable:$true] %s187
          %190 = dma.hbm_to_vmem [thread:$0]  %s185, 256, %s188, %s176
        $region28: #{tpu_custom_call.1} parent=23 // pred_fallthru
          _
        // Predicated region
        $region29: #{tpu_custom_call.1} parent=23 // pred_check
          %p191 = pneg %p105
        $region30: #{tpu_custom_call.1} parent=23 // pred_check_branch
          %193 = sbr.rel (%p191) target = $region32
        $region31: #{tpu_custom_call.1} parent=23 // pred_region
          %p194 = scmp.lt.s32.totalorder %s17, 1
          %s195 = scalar_select %p194, %s17, 1
          %s196 = smul.addr %s195, 4
          %s197 = scalar_lea.vmem %s3, %s196
        $region32: #{tpu_custom_call.1} parent=23 // pred_fallthru
          _
      $region24: #{tpu_custom_call.1} parent=5 // pred_fallthru
        _
      %p198 = scmp.le.s32.totalorder 1, %s17
      %p199 = scmp.lt.s32.totalorder %s17, 3
      %p200 = pnand %p198, %p199
      %p201 = pneg %p200
      // Predicated region
      $region33: #{tpu_custom_call.1} parent=5 // pred_check
        _
      $region34: #{tpu_custom_call.1} parent=5 // pred_check_branch
        %203 = sbr.rel (%p200) target = $region36
      $region35: #{tpu_custom_call.1} parent=5 // pred_region
        %s204 = ssub.s32 %s17, 1
        %s205 = sand.u32 %s30, 1
        %s206 = scalar_lea.sflag [#allocation3], %s205
        %s207 = sand.u32 %s30, 1
        %s208 = smul.addr %s207, 16
        %s209 = scalar_lea.vmem [#allocation2], %s208
        // Predicated region
        $region37: #{tpu_custom_call.1} parent=35 // pred_check
          %p210 = pneg %p43
        $region38: #{tpu_custom_call.1} parent=35 // pred_check_branch
          %212 = sbr.rel (%p210) target = $region40
        $region39: #{tpu_custom_call.1} parent=35 // pred_region
          %213 = dma.done %s206, 256
        $region40: #{tpu_custom_call.1} parent=35 // pred_fallthru
          _
        // Predicated region
        $region41: #{tpu_custom_call.1} parent=35 // pred_check
          %p214 = pneg %p64
        $region42: #{tpu_custom_call.1} parent=35 // pred_check_branch
          %216 = sbr.rel (%p214) target = $region44
        $region43: #{tpu_custom_call.1} parent=35 // pred_region
          %217 = dma.done [#allocation6], 4096
        $region44: #{tpu_custom_call.1} parent=35 // pred_fallthru
          _
        %s218 = sand.u32 %s30, 1
        %s219 = scalar_lea.sflag [#allocation3], %s218
        %s220 = sand.u32 %s30, 1
        %s221 = smul.addr %s220, 16
        %s222 = scalar_lea.vmem [#allocation2], %s221
        %p223 = pneg %p43
        %p224 = pneg %p40
        %p225 = pneg %p64
        %p226 = pneg %p61
        %p227 = pneg %p85
        %p228 = pneg %p82
        %p229 = scmp.lt.s32.totalorder %s22, 1
        %s230 = scalar_select %p229, %s22, 1
        %s231 = smul.addr %s230, 4
        %s232 = scalar_lea.vmem %s3, %s231
        %p233 = pneg %p111
        %p234 = pneg %p108
        %p235 = pneg %p137
        %p236 = pneg %p134
        %s237 = sand.u32 %s124, 1
        %s238 = scalar_lea.sflag [#allocation4], %s237
        %s239 = sand.u32 %s124, 1
        %s240 = smul.addr %s239, 4
        %s241 = scalar_lea.vmem [#allocation7], %s240
        %p242 = scmp.lt.s32.totalorder %s22, 1
        %s243 = scalar_select %p242, %s22, 1
        %s244 = smul.addr %s243, 4
        %s245 = scalar_lea.vmem %s3, %s244
        %v247 = vld [vmem:[%s209] sm:$0xff]
        %v248 = vld [vmem:[%s209 + $0x8] sm:$0xff]
        %v249 = vld [vmem:[#allocation5] sm:$0xf]
        %v250 = vld [vmem:[#allocation5 + $0x4] sm:$0xf]
        %v251 = vld [vmem:[#allocation5 + $0x8] sm:$0xf]
        %v252 = vld [vmem:[#allocation5 + $0xc] sm:$0xf]
        %v253 = vld [vmem:[#allocation5 + $0x10] sm:$0xf]
        %v254 = vld [vmem:[#allocation5 + $0x14] sm:$0xf]
        %v255 = vld [vmem:[#allocation5 + $0x18] sm:$0xf]
        %v256 = vld [vmem:[#allocation5 + $0x1c] sm:$0xf]
        %v257 = vld [vmem:[#allocation5 + $0x20] sm:$0xf]
        %v258 = vld [vmem:[#allocation5 + $0x24] sm:$0xf]
        %v259 = vld [vmem:[#allocation5 + $0x28] sm:$0xf]
        %v260 = vld [vmem:[#allocation5 + $0x2c] sm:$0xf]
        %v261 = vld [vmem:[#allocation5 + $0x30] sm:$0xf]
        %v262 = vld [vmem:[#allocation5 + $0x34] sm:$0xf]
        %v263 = vld [vmem:[#allocation5 + $0x38] sm:$0xf]
        %v264 = vld [vmem:[#allocation5 + $0x3c] sm:$0xf]
        %v265 = vld [vmem:[#allocation5 + $0x40] sm:$0xf]
        %v266 = vld [vmem:[#allocation5 + $0x44] sm:$0xf]
        %v267 = vld [vmem:[#allocation5 + $0x48] sm:$0xf]
        %v268 = vld [vmem:[#allocation5 + $0x4c] sm:$0xf]
        %v269 = vld [vmem:[#allocation5 + $0x50] sm:$0xf]
        %v270 = vld [vmem:[#allocation5 + $0x54] sm:$0xf]
        %v271 = vld [vmem:[#allocation5 + $0x58] sm:$0xf]
        %v272 = vld [vmem:[#allocation5 + $0x5c] sm:$0xf]
        %v273 = vld [vmem:[#allocation5 + $0x60] sm:$0xf]
        %v274 = vld [vmem:[#allocation5 + $0x64] sm:$0xf]
        %v275 = vld [vmem:[#allocation5 + $0x68] sm:$0xf]
        %v276 = vld [vmem:[#allocation5 + $0x6c] sm:$0xf]
        %v277 = vld [vmem:[#allocation5 + $0x70] sm:$0xf]
        %v278 = vld [vmem:[#allocation5 + $0x74] sm:$0xf]
        %v279 = vld [vmem:[#allocation5 + $0x78] sm:$0xf]
        %v280 = vld [vmem:[#allocation5 + $0x7c] sm:$0xf]
        %v281 = vld [vmem:[#allocation5 + $0x80] sm:$0xf]
        %v282 = vld [vmem:[#allocation5 + $0x84] sm:$0xf]
        %v283 = vld [vmem:[#allocation5 + $0x88] sm:$0xf]
        %v284 = vld [vmem:[#allocation5 + $0x8c] sm:$0xf]
        %v285 = vld [vmem:[#allocation5 + $0x90] sm:$0xf]
        %v286 = vld [vmem:[#allocation5 + $0x94] sm:$0xf]
        %v287 = vld [vmem:[#allocation5 + $0x98] sm:$0xf]
        %v288 = vld [vmem:[#allocation5 + $0x9c] sm:$0xf]
        %v289 = vld [vmem:[#allocation5 + $0xa0] sm:$0xf]
        %v290 = vld [vmem:[#allocation5 + $0xa4] sm:$0xf]
        %v291 = vld [vmem:[#allocation5 + $0xa8] sm:$0xf]
        %v292 = vld [vmem:[#allocation5 + $0xac] sm:$0xf]
        %v293 = vld [vmem:[#allocation5 + $0xb0] sm:$0xf]
        %v294 = vld [vmem:[#allocation5 + $0xb4] sm:$0xf]
        %v295 = vld [vmem:[#allocation5 + $0xb8] sm:$0xf]
        %v296 = vld [vmem:[#allocation5 + $0xbc] sm:$0xf]
        %v297 = vld [vmem:[#allocation5 + $0xc0] sm:$0xf]
        %v298 = vld [vmem:[#allocation5 + $0xc4] sm:$0xf]
        %v299 = vld [vmem:[#allocation5 + $0xc8] sm:$0xf]
        %v300 = vld [vmem:[#allocation5 + $0xcc] sm:$0xf]
        %v301 = vld [vmem:[#allocation5 + $0xd0] sm:$0xf]
        %v302 = vld [vmem:[#allocation5 + $0xd4] sm:$0xf]
        %v303 = vld [vmem:[#allocation5 + $0xd8] sm:$0xf]
        %v304 = vld [vmem:[#allocation5 + $0xdc] sm:$0xf]
        %v305 = vld [vmem:[#allocation5 + $0xe0] sm:$0xf]
        %v306 = vld [vmem:[#allocation5 + $0xe4] sm:$0xf]
        %v307 = vld [vmem:[#allocation5 + $0xe8] sm:$0xf]
        %v308 = vld [vmem:[#allocation5 + $0xec] sm:$0xf]
        %v309 = vld [vmem:[#allocation5 + $0xf0] sm:$0xf]
        %v310 = vld [vmem:[#allocation5 + $0xf4] sm:$0xf]
        %v311 = vld [vmem:[#allocation5 + $0xf8] sm:$0xf]
        %v312 = vld [vmem:[#allocation5 + $0xfc] sm:$0xf]
        %v313 = vld [vmem:[%s2] sm:$0x1]
        %v315 = vlaneseq
        %v316 = vshrl.u32 %v315, 7
        %v317 = vsub.s32 0, %v316
        %v318 = vrot.slane %v313, %v317
        %v322 = vunpack.c.l.b16 %v247
        %v323 = vunpack.c.h.b16 %v247
        %v324 = vunpack.c.l.b16 %v248
        %v325 = vunpack.c.h.b16 %v248
        %v326 = vpack.c.b16 %v322, %v322
        %v327 = vpack.c.b16 %v323, %v323
        %v328 = vpack.c.b16 %v324, %v324
        %v329 = vpack.c.b16 %v325, %v325
        %v398 = vunpack.c.l.b16 %v249
        %v399 = vunpack.c.l.b16 %v250
        %v400 = vunpack.c.l.b16 %v251
        %v401 = vunpack.c.l.b16 %v252
        %v402 = vunpack.c.l.b16 %v253
        %v403 = vunpack.c.l.b16 %v254
        %v404 = vunpack.c.l.b16 %v255
        %v405 = vunpack.c.l.b16 %v256
        %v406 = vunpack.c.l.b16 %v257
        %v407 = vunpack.c.l.b16 %v258
        %v408 = vunpack.c.l.b16 %v259
        %v409 = vunpack.c.l.b16 %v260
        %v410 = vunpack.c.l.b16 %v261
        %v411 = vunpack.c.l.b16 %v262
        %v412 = vunpack.c.l.b16 %v263
        %v413 = vunpack.c.l.b16 %v264
        %v414 = vunpack.c.l.b16 %v265
        %v415 = vunpack.c.l.b16 %v266
        %v416 = vunpack.c.l.b16 %v267
        %v417 = vunpack.c.l.b16 %v268
        %v418 = vunpack.c.l.b16 %v269
        %v419 = vunpack.c.l.b16 %v270
        %v420 = vunpack.c.l.b16 %v271
        %v421 = vunpack.c.l.b16 %v272
        %v422 = vunpack.c.l.b16 %v273
        %v423 = vunpack.c.l.b16 %v274
        %v424 = vunpack.c.l.b16 %v275
        %v425 = vunpack.c.l.b16 %v276
        %v426 = vunpack.c.l.b16 %v277
        %v427 = vunpack.c.l.b16 %v278
        %v428 = vunpack.c.l.b16 %v279
        %v429 = vunpack.c.l.b16 %v280
        %v430 = vunpack.c.l.b16 %v281
        %v431 = vunpack.c.l.b16 %v282
        %v432 = vunpack.c.l.b16 %v283
        %v433 = vunpack.c.l.b16 %v284
        %v434 = vunpack.c.l.b16 %v285
        %v435 = vunpack.c.l.b16 %v286
        %v436 = vunpack.c.l.b16 %v287
        %v437 = vunpack.c.l.b16 %v288
        %v438 = vunpack.c.l.b16 %v289
        %v439 = vunpack.c.l.b16 %v290
        %v440 = vunpack.c.l.b16 %v291
        %v441 = vunpack.c.l.b16 %v292
        %v442 = vunpack.c.l.b16 %v293
        %v443 = vunpack.c.l.b16 %v294
        %v444 = vunpack.c.l.b16 %v295
        %v445 = vunpack.c.l.b16 %v296
        %v446 = vunpack.c.l.b16 %v297
        %v447 = vunpack.c.l.b16 %v298
        %v448 = vunpack.c.l.b16 %v299
        %v449 = vunpack.c.l.b16 %v300
        %v450 = vunpack.c.l.b16 %v301
        %v451 = vunpack.c.l.b16 %v302
        %v452 = vunpack.c.l.b16 %v303
        %v453 = vunpack.c.l.b16 %v304
        %v454 = vunpack.c.l.b16 %v305
        %v455 = vunpack.c.l.b16 %v306
        %v456 = vunpack.c.l.b16 %v307
        %v457 = vunpack.c.l.b16 %v308
        %v458 = vunpack.c.l.b16 %v309
        %v459 = vunpack.c.l.b16 %v310
        %v460 = vunpack.c.l.b16 %v311
        %v461 = vunpack.c.l.b16 %v312
        %v462 = vpack.c.b16 %v399, %v398
        %v463 = vpack.c.b16 %v401, %v400
        %v464 = vpack.c.b16 %v403, %v402
        %v465 = vpack.c.b16 %v405, %v404
        %v466 = vpack.c.b16 %v407, %v406
        %v467 = vpack.c.b16 %v409, %v408
        %v468 = vpack.c.b16 %v411, %v410
        %v469 = vpack.c.b16 %v413, %v412
        %v470 = vpack.c.b16 %v415, %v414
        %v471 = vpack.c.b16 %v417, %v416
        %v472 = vpack.c.b16 %v419, %v418
        %v473 = vpack.c.b16 %v421, %v420
        %v474 = vpack.c.b16 %v423, %v422
        %v475 = vpack.c.b16 %v425, %v424
        %v476 = vpack.c.b16 %v427, %v426
        %v477 = vpack.c.b16 %v429, %v428
        %v478 = vpack.c.b16 %v431, %v430
        %v479 = vpack.c.b16 %v433, %v432
        %v480 = vpack.c.b16 %v435, %v434
        %v481 = vpack.c.b16 %v437, %v436
        %v482 = vpack.c.b16 %v439, %v438
        %v483 = vpack.c.b16 %v441, %v440
        %v484 = vpack.c.b16 %v443, %v442
        %v485 = vpack.c.b16 %v445, %v444
        %v486 = vpack.c.b16 %v447, %v446
        %v487 = vpack.c.b16 %v449, %v448
        %v488 = vpack.c.b16 %v451, %v450
        %v489 = vpack.c.b16 %v453, %v452
        %v490 = vpack.c.b16 %v455, %v454
        %v491 = vpack.c.b16 %v457, %v456
        %v492 = vpack.c.b16 %v459, %v458
        %v493 = vpack.c.b16 %v461, %v460
        %526 = vmatprep.subr.bf16.mxu0 0
        %527 = vmatpush1.bf16.msra.mxu0 %v462
        %528 = vmatprep.subr.bf16.mxu0 0
        %529 = vmatpush1.bf16.msra.mxu0 %v463
        %530 = vmatprep.subr.bf16.mxu0 0
        %531 = vmatpush1.bf16.msra.mxu0 %v464
        %532 = vmatprep.subr.bf16.mxu0 0
        %533 = vmatpush1.bf16.msra.mxu0 %v465
        %534 = vmatprep.subr.bf16.mxu0 0
        %535 = vmatpush1.bf16.msra.mxu0 %v466
        %536 = vmatprep.subr.bf16.mxu0 0
        %537 = vmatpush1.bf16.msra.mxu0 %v467
        %538 = vmatprep.subr.bf16.mxu0 0
        %539 = vmatpush1.bf16.msra.mxu0 %v468
        %540 = vmatprep.subr.bf16.mxu0 0
        %541 = vmatpush1.bf16.msra.mxu0 %v469
        %542 = vmatprep.subr.bf16.mxu0 0
        %543 = vmatpush1.bf16.msra.mxu0 %v470
        %544 = vmatprep.subr.bf16.mxu0 0
        %545 = vmatpush1.bf16.msra.mxu0 %v471
        %546 = vmatprep.subr.bf16.mxu0 0
        %547 = vmatpush1.bf16.msra.mxu0 %v472
        %548 = vmatprep.subr.bf16.mxu0 0
        %549 = vmatpush1.bf16.msra.mxu0 %v473
        %550 = vmatprep.subr.bf16.mxu0 0
        %551 = vmatpush1.bf16.msra.mxu0 %v474
        %552 = vmatprep.subr.bf16.mxu0 0
        %553 = vmatpush1.bf16.msra.mxu0 %v475
        %554 = vmatprep.subr.bf16.mxu0 0
        %555 = vmatpush1.bf16.msra.mxu0 %v476
        %556 = vmatprep.subr.bf16.mxu0 0
        %557 = vmatpush1.bf16.msra.mxu0 %v477
        %558 = vmatprep.mubr.bf16.mxu0 %v327
        %559 = vmatmul.mubr.bf16.gmra.mrb[0].mxu0 %v326
        %v560 = vpop.f32.mrb[0].mxu0
        %v561 = vadd.f32 %v318, %v560
        %v562 = vpop.f32.mrb[0].mxu0
        %v563 = vpop.f32.mrb[0].mxu0
        %v564 = vpop.f32.mrb[0].mxu0
        %565 = vdwg.mxu0
        %566 = vmatprep.subr.bf16.mxu0 0
        %567 = vmatpush1.bf16.msra.mxu0 %v478
        %568 = vmatprep.subr.bf16.mxu0 0
        %569 = vmatpush1.bf16.msra.mxu0 %v479
        %570 = vmatprep.subr.bf16.mxu0 0
        %571 = vmatpush1.bf16.msra.mxu0 %v480
        %572 = vmatprep.subr.bf16.mxu0 0
        %573 = vmatpush1.bf16.msra.mxu0 %v481
        %574 = vmatprep.subr.bf16.mxu0 0
        %575 = vmatpush1.bf16.msra.mxu0 %v482
        %576 = vmatprep.subr.bf16.mxu0 0
        %577 = vmatpush1.bf16.msra.mxu0 %v483
        %578 = vmatprep.subr.bf16.mxu0 0
        %579 = vmatpush1.bf16.msra.mxu0 %v484
        %580 = vmatprep.subr.bf16.mxu0 0
        %581 = vmatpush1.bf16.msra.mxu0 %v485
        %582 = vmatprep.subr.bf16.mxu0 0
        %583 = vmatpush1.bf16.msra.mxu0 %v486
        %584 = vmatprep.subr.bf16.mxu0 0
        %585 = vmatpush1.bf16.msra.mxu0 %v487
        %586 = vmatprep.subr.bf16.mxu0 0
        %587 = vmatpush1.bf16.msra.mxu0 %v488
        %588 = vmatprep.subr.bf16.mxu0 0
        %589 = vmatpush1.bf16.msra.mxu0 %v489
        %590 = vmatprep.subr.bf16.mxu0 0
        %591 = vmatpush1.bf16.msra.mxu0 %v490
        %592 = vmatprep.subr.bf16.mxu0 0
        %593 = vmatpush1.bf16.msra.mxu0 %v491
        %594 = vmatprep.subr.bf16.mxu0 0
        %595 = vmatpush1.bf16.msra.mxu0 %v492
        %596 = vmatprep.subr.bf16.mxu0 0
        %597 = vmatpush1.bf16.msra.mxu0 %v493
        %598 = vmatprep.mubr.bf16.mxu0 %v329
        %599 = vmatmul.mubr.bf16.gmra.mrb[0].mxu0 %v328
        %v600 = vpop.f32.mrb[0].mxu0
        %v601 = vadd.f32 %v561, %v600
        %v602 = vpop.f32.mrb[0].mxu0
        %v603 = vpop.f32.mrb[0].mxu0
        %v604 = vpop.f32.mrb[0].mxu0
        %605 = vdwg.mxu0
        %v606 = vld [vmem:[%s245] sm:$0xf]
        %v607 = vunpack.c.l.bf16 %v606
        %609 = vset.pattern.permute.xlu0 0
        %610 = vperm.xlu0 %609, %v607
        %v611 = vpop.permute.xlu0 %610
        %v613 = vmul.f32 %v601, %v611
        %v614 = vpack.c.bf16 %v613, %v613
        %615 = vst [vmem:[%s241] sm:$0xf] %v614
        %s616 = sand.u32 %s124, 1
        %s617 = scalar_lea.sflag [#allocation4], %s616
        %s618 = sand.u32 %s124, 1
        %s619 = smul.addr %s618, 4
        %s620 = scalar_lea.vmem [#allocation7], %s619
        // Predicated region
        $region45: #{tpu_custom_call.1} parent=35 // pred_check
          %p621 = pneg %p134
        $region46: #{tpu_custom_call.1} parent=35 // pred_check_branch
          %623 = sbr.rel (%p621) target = $region48
        $region47: #{tpu_custom_call.1} parent=35 // pred_region
          %s625 = ssub.s32 64, 64
          %626 = vsyncadd %s617, %s625
          %s627 = smul.addr %s22, 64
          %s628 = scalar_lea.hbm %s4, %s627
          %s630 = sshll.u32 %s620, 4
          %s631 = int_to_ptr.vmem [resolvable:$true] %s630
          %633 = dma.vmem_to_hbm [thread:$0]  %s631, 64, %s628, %s617
        $region48: #{tpu_custom_call.1} parent=35 // pred_fallthru
          _
      $region36: #{tpu_custom_call.1} parent=5 // pred_fallthru
        _
      %p634 = scmp.le.s32.totalorder 2, %s17
      // Predicated region
      $region49: #{tpu_custom_call.1} parent=5 // pred_check
        %p635 = pneg %p634
      $region50: #{tpu_custom_call.1} parent=5 // pred_check_branch
        %637 = sbr.rel (%p635) target = $region52
      $region51: #{tpu_custom_call.1} parent=5 // pred_region
        %s638 = ssub.s32 %s17, 2
        // Predicated region
        $region53: #{tpu_custom_call.1} parent=51 // pred_check
          %p639 = pneg %p140
        $region54: #{tpu_custom_call.1} parent=51 // pred_check_branch
          %641 = sbr.rel (%p639) target = $region56
        $region55: #{tpu_custom_call.1} parent=51 // pred_region
          %s642 = sand.u32 %s125, 1
          %s643 = scalar_lea.sflag [#allocation4], %s642
          %s644 = sand.u32 %s125, 1
          %s645 = smul.addr %s644, 4
          %s646 = scalar_lea.vmem [#allocation7], %s645
          %647 = dma.done %s643, 64
        $region56: #{tpu_custom_call.1} parent=51 // pred_fallthru
          _
      $region52: #{tpu_custom_call.1} parent=5 // pred_fallthru
        _
    $region6: #{tpu_custom_call.1} parent=1 // loop_footer
      %s21 = sadd.s32 1, %s17
    $region7: #{tpu_custom_call.1} parent=1 // loop_footer_branch
      %16 = sbr.rel target = $region3
    $region8: #{tpu_custom_call.1} parent=1 // loop_exit
      _
    %648 = vsyncpa [#allocation3], 1
    %s649 = scalar_lea.sflag [#allocation3], 1
    %650 = vsyncpa %s649, 1
    %651 = vsyncpa [#allocation6], 1
    %652 = vsyncpa [#allocation4], 1
    %s653 = scalar_lea.sflag [#allocation4], 1
    %654 = vsyncpa %s653, 1

</llo_original>
